<compile_context>
chip_gen: v7x
topology: tpu7x:2x2x1
jax: 0.10.0
libtpu: 0.0.40
codegen_flags: <defaults>
</compile_context>

<pallas_src>
import functools

import jax
import jax.numpy as jnp
from jax import lax
from jax.experimental import pallas as pl
from jax.experimental.pallas import tpu as pltpu

GAMMA = 2.0
ALPHA = 0.25

_MIB = 1024 * 1024


def focal_loss_kernel(x_ref, t_ref, out_ref, *, gamma, alpha, n_valid, row_tile):
    i = pl.program_id(0)

    x = x_ref[...].astype(jnp.float32)        # (TN, C), upcast in VMEM
    t = t_ref[...]                            # (TN, 1) int32

    # Numerically stable log-softmax pieces along the class (lane) axis.
    m = jnp.max(x, axis=1, keepdims=True)
    shifted = x - m
    lse = jnp.log(jnp.sum(jnp.exp(shifted), axis=1, keepdims=True))

    # Gather the target-class value via a one-hot mask (no dynamic gather on
    # TPU).  log_probs is never materialized:  log_pt = shifted[target] - lse.
    # Out-of-range / negative target ids yield an all-false one-hot (log_pt =
    # -lse); inputs are assumed validated upstream.
    cls_idx = lax.broadcasted_iota(jnp.int32, x.shape, 1)
    onehot = cls_idx == t                                         # (TN, C)
    log_pt = jnp.sum(jnp.where(onehot, shifted, 0.0), axis=1, keepdims=True) - lse
    # Clamp: pt = exp(log_pt) can round to > 1, which would make
    # (1 - pt) ** gamma NaN for non-integer gamma.
    log_pt = jnp.minimum(log_pt, 0.0)
    pt = jnp.exp(log_pt)                                          # (TN, 1)

    one_minus_pt = jnp.maximum(1.0 - pt, 0.0)
    if float(gamma) == 2.0:
        focal = one_minus_pt * one_minus_pt      # VPU multiply, no EUP pow/log
    else:
        focal = jnp.power(one_minus_pt, gamma)
    loss = -alpha * focal * log_pt                                # (TN, 1)

    # Mask rows beyond N (ragged last tile -- no host-side padding).  Keep this
    # exactly here: after the loss, before the sum.
    row_iota = lax.broadcasted_iota(jnp.int32, loss.shape, 0)
    global_row = i * row_tile + row_iota
    loss = jnp.where(global_row < n_valid, loss, 0.0)

    partial = jnp.sum(loss)                                       # scalar f32

    # Lane/sublane-dense (8, 128) store of the per-tile partial sum (value in
    # [0, 0], zeros elsewhere) -> unmasked vst, no cross-step dependency, and
    # the grid axis can be "parallel".
    sub = lax.broadcasted_iota(jnp.int32, (8, 128), 0)
    lane = lax.broadcasted_iota(jnp.int32, (8, 128), 1)
    out_ref[...] = jnp.where((sub == 0) & (lane == 0), partial, 0.0).astype(
        out_ref.dtype
    )


def _vmem_budget_bytes():
    """Generation-aware scoped VMEM limit (v7x: 64 MiB physical, else 128)."""
    cap = 64 * _MIB
    try:
        info = pltpu.get_tpu_info()
        cap = int(getattr(info, "vmem_capacity_bytes", cap))
    except Exception:
        pass
    # Use at most half the physical VMEM for this kernel's scoped allocation.
    return min(cap // 2, 64 * _MIB)


def _pick_row_tile(n, c, itemsize, vmem_limit_bytes):
    """Size the row tile by bytes, not a fixed row cap.

    Accounts for:
      * the (row_tile, 1) int32 targets block being lane-padded to 128 in VMEM
        (512 B/row regardless of its logical 4 B/row),
      * ~4 f32 (row_tile, C) in-kernel temporaries,
      * double-buffered input blocks,
    and caps the per-step DMA granule at ~limit/8 (<= 8 MiB), i.e. ~4 MiB on
    v7x (32 MiB scoped) and ~8 MiB on v5e/v6e.
    """
    lane_padded_tgt_row = 128 * 4                 # (rt, 1) i32 pads to 128 lanes
    blk_row = c * itemsize + lane_padded_tgt_row  # DMA bytes per row
    tmp_row = 4 * c * 4                           # f32 temporaries per row

    # Fit: 2x double-buffered input blocks + temps within ~3/4 of the limit.
    rt_fit = (3 * vmem_limit_bytes // 4) // (2 * blk_row + tmp_row)
    # Per-step DMA granule cap.
    blk_cap_bytes = min(vmem_limit_bytes // 8, 8 * _MIB)
    rt_cap = blk_cap_bytes // blk_row

    rt = max(8, min(int(rt_fit), int(rt_cap)) // 8 * 8)

    n_aligned = ((n + 7) // 8) * 8
    # Guarantee >= 2 grid tiles (feeds both v7x TensorCores; harmless on
    # v5e/v6e) as long as each block stays >= ~1 MiB.
    half = ((-(-n_aligned // 2)) + 7) // 8 * 8
    if half * blk_row >= _MIB:
        rt = min(rt, half)

    return min(rt, n_aligned)


def focal_loss(inputs, targets, gamma=GAMMA, alpha=ALPHA, reduction="mean",
               row_tile=None):
    """inputs: (N, C) float logits (f32 or bf16); targets: (N,) int class ids."""
    if reduction not in ("mean", "sum"):
        # TODO(synk): reduction='none' (per-row loss output) not implemented.
        raise NotImplementedError("reduction must be 'mean' or 'sum'")

    n, c = inputs.shape

    # Keep the logits in their native float dtype (no host-side f32 copy); the
    # upcast happens inside the kernel.  Non-float inputs fall back to f32.
    x = inputs
    if not jnp.issubdtype(x.dtype, jnp.floating):
        x = x.astype(jnp.float32)
    itemsize = jnp.dtype(x.dtype).itemsize

    vmem_limit = _vmem_budget_bytes()
    if row_tile is None:
        row_tile = _pick_row_tile(n, c, itemsize, vmem_limit)
    assert row_tile % 8 == 0 and row_tile > 0

    num_tiles = -(-n // row_tile)            # cdiv; ragged last block is OK
    t2d = targets.astype(jnp.int32).reshape(n, 1)

    kernel = functools.partial(
        focal_loss_kernel, gamma=gamma, alpha=alpha, n_valid=n,
        row_tile=row_tile,
    )

    cost = pl.CostEstimate(
        flops=int(6 * n * c),
        transcendentals=int(n * (c + 1)),
        bytes_accessed=int(n * c * itemsize + n * 4
                           + num_tiles * 8 * 128 * 4),
    )

    partials = pl.pallas_call(
        kernel,
        out_shape=jax.ShapeDtypeStruct((num_tiles * 8, 128), jnp.float32),
        grid_spec=pltpu.PrefetchScalarGridSpec(
            num_scalar_prefetch=0,
            grid=(num_tiles,),
            in_specs=[
                pl.BlockSpec((row_tile, c), lambda i: (i, 0)),
                pl.BlockSpec((row_tile, 1), lambda i: (i, 0)),
            ],
            out_specs=pl.BlockSpec((8, 128), lambda i: (i, 0)),
        ),
        compiler_params=pltpu.CompilerParams(
            dimension_semantics=("parallel",),
            vmem_limit_bytes=vmem_limit,
        ),
        cost_estimate=cost,
    )(x, t2d)

    total = jnp.sum(partials)
    if reduction == "mean":
        return total / jnp.float32(n)
    return total


def focal_loss_ref(inputs, targets, gamma=GAMMA, alpha=ALPHA):
    log_probs = jax.nn.log_softmax(inputs.astype(jnp.float32), axis=1)
    log_pt = jnp.take_along_axis(log_probs, targets[:, None], axis=1)[:, 0]
    pt = jnp.exp(log_pt)
    loss = -alpha * (1.0 - pt) ** gamma * log_pt
    return jnp.mean(loss)


if __name__ == "__main__":
    key = jax.random.PRNGKey(0)
    k1, k2, k3 = jax.random.split(key, 3)

    # Small shapes; N deliberately not a multiple of 8 to exercise the ragged
    # (unpadded) last-tile masked path.
    N, C = 37, 16
    logits = jax.random.normal(k1, (N, C), dtype=jnp.float32)
    targets = jax.random.randint(k2, (N,), 0, C, dtype=jnp.int32)

    ref = focal_loss_ref(logits, targets)

    # 1) Default (bytes-sized) row tile -> single tile here.
    out = jax.block_until_ready(focal_loss(logits, targets))
    assert jnp.allclose(out, ref, rtol=1e-5, atol=1e-6), (out, ref)

    # 2) Forced small tile -> multi-tile "parallel" partial-sum path with a
    #    ragged last block (rows 32..47, only 37 valid).
    out_mt = jax.block_until_ready(focal_loss(logits, targets, row_tile=16))
    assert jnp.allclose(out_mt, ref, rtol=1e-5, atol=1e-6), (out_mt, ref)

    # 3) bf16 logits read in native dtype (no host f32 copy), upcast in-kernel.
    N2, C2 = 64, 128
    logits_bf16 = jax.random.normal(k3, (N2, C2), dtype=jnp.float32).astype(
        jnp.bfloat16)
    targets2 = jax.random.randint(k2, (N2,), 0, C2, dtype=jnp.int32)
    ref_bf16 = focal_loss_ref(logits_bf16, targets2)
    out_bf16 = jax.block_until_ready(focal_loss(logits_bf16, targets2))
    assert jnp.allclose(out_bf16, ref_bf16, rtol=2e-2, atol=2e-3), (
        out_bf16, ref_bf16)

    print("KERNEL_OK")
</pallas_src>

<mosaic_0001>
module attributes {stable_mosaic.version = 11 : i64} {
  func.func @focal_loss_kernel(%arg0: i32, %arg1: memref<40x16xf32, #tpu.memory_space<vmem>>, %arg2: memref<40x1xi32, #tpu.memory_space<vmem>>, %arg3: memref<8x128xf32, #tpu.memory_space<vmem>>) attributes {dimension_semantics = [#tpu.dimension_semantics<parallel>], iteration_bounds = array<i64: 1>, scalar_prefetch = 0 : i64, scratch_operands = 0 : i64, tpu.core_type = #tpu.core_type<tc>, window_params = [{transform_indices = @transform_0, window_bounds = array<i64: 40, 16>}, {transform_indices = @transform_1, window_bounds = array<i64: 40, 1>}, {transform_indices = @transform_2, window_bounds = array<i64: 8, 128>}]} {
    %c0 = arith.constant 0 : index
    %c0_0 = arith.constant 0 : index
    %0 = vector.load %arg1[%c0, %c0_0] : memref<40x16xf32, #tpu.memory_space<vmem>>, vector<40x16xf32>
    %c0_1 = arith.constant 0 : index
    %c0_2 = arith.constant 0 : index
    %1 = vector.load %arg2[%c0_1, %c0_2] : memref<40x1xi32, #tpu.memory_space<vmem>>, vector<40x1xi32>
    %cst = arith.constant dense<0xFF800000> : vector<40xf32>
    %2 = vector.multi_reduction <maximumf>, %0, %cst [1] : vector<40x16xf32> to vector<40xf32>
    %3 = vector.shape_cast %2 : vector<40xf32> to vector<40x1xf32>
    %4 = vector.broadcast %3 : vector<40x1xf32> to vector<40x16xf32>
    %5 = arith.subf %0, %4 : vector<40x16xf32>
    %6 = math.exp %5 : vector<40x16xf32>
    %cst_3 = arith.constant dense<0.000000e+00> : vector<40xf32>
    %7 = vector.multi_reduction <add>, %6, %cst_3 [1] : vector<40x16xf32> to vector<40xf32>
    %8 = vector.shape_cast %7 : vector<40xf32> to vector<40x1xf32>
    %9 = math.log %8 : vector<40x1xf32>
    %10 = tpu.iota {dimensions = array<i32: 1>} : vector<40x16xi32>
    %11 = vector.broadcast %1 : vector<40x1xi32> to vector<40x16xi32>
    %12 = arith.cmpi eq, %10, %11 : vector<40x16xi32>
    %cst_4 = arith.constant 0.000000e+00 : f32
    %13 = vector.broadcast %cst_4 : f32 to vector<40x16xf32>
    %14 = arith.select %12, %5, %13 : vector<40x16xi1>, vector<40x16xf32>
    %cst_5 = arith.constant dense<0.000000e+00> : vector<40xf32>
    %15 = vector.multi_reduction <add>, %14, %cst_5 [1] : vector<40x16xf32> to vector<40xf32>
    %16 = vector.shape_cast %15 : vector<40xf32> to vector<40x1xf32>
    %17 = arith.subf %16, %9 : vector<40x1xf32>
    %cst_6 = arith.constant 0.000000e+00 : f32
    %18 = vector.broadcast %cst_6 : f32 to vector<40x1xf32>
    %19 = arith.minimumf %17, %18 : vector<40x1xf32>
    %20 = math.exp %19 : vector<40x1xf32>
    %cst_7 = arith.constant 1.000000e+00 : f32
    %21 = vector.broadcast %cst_7 : f32 to vector<40x1xf32>
    %22 = arith.subf %21, %20 : vector<40x1xf32>
    %cst_8 = arith.constant 0.000000e+00 : f32
    %23 = vector.broadcast %cst_8 : f32 to vector<40x1xf32>
    %24 = arith.maximumf %22, %23 : vector<40x1xf32>
    %25 = arith.mulf %24, %24 : vector<40x1xf32>
    %cst_9 = arith.constant -2.500000e-01 : f32
    %26 = vector.broadcast %cst_9 : f32 to vector<40x1xf32>
    %27 = arith.mulf %26, %25 : vector<40x1xf32>
    %28 = arith.mulf %27, %19 : vector<40x1xf32>
    %29 = tpu.iota {dimensions = array<i32: 0>} : vector<40x1xi32>
    %c40_i32 = arith.constant 40 : i32
    %30 = arith.muli %arg0, %c40_i32 : i32
    %31 = vector.broadcast %30 : i32 to vector<40x1xi32>
    %32 = arith.addi %31, %29 : vector<40x1xi32>
    %c37_i32 = arith.constant 37 : i32
    %33 = vector.broadcast %c37_i32 : i32 to vector<40x1xi32>
    %34 = arith.cmpi slt, %32, %33 : vector<40x1xi32>
    %cst_10 = arith.constant 0.000000e+00 : f32
    %35 = vector.broadcast %cst_10 : f32 to vector<40x1xf32>
    %36 = arith.select %34, %28, %35 : vector<40x1xi1>, vector<40x1xf32>
    %37 = vector.shape_cast %36 : vector<40x1xf32> to vector<1x40x1xf32>
    %cst_11 = arith.constant dense<0.000000e+00> : vector<1xf32>
    %38 = vector.multi_reduction <add>, %37, %cst_11 [1, 2] : vector<1x40x1xf32> to vector<1xf32>
    %39 = vector.shape_cast %38 : vector<1xf32> to vector<1x1x1xf32>
    %40 = vector.extract %39[0, 0, 0] : f32 from vector<1x1x1xf32>
    %41 = tpu.iota {dimensions = array<i32: 0>} : vector<8x128xi32>
    %42 = tpu.iota {dimensions = array<i32: 1>} : vector<8x128xi32>
    %c0_i32 = arith.constant 0 : i32
    %43 = vector.broadcast %c0_i32 : i32 to vector<8x128xi32>
    %44 = arith.cmpi eq, %41, %43 : vector<8x128xi32>
    %c0_i32_12 = arith.constant 0 : i32
    %45 = vector.broadcast %c0_i32_12 : i32 to vector<8x128xi32>
    %46 = arith.cmpi eq, %42, %45 : vector<8x128xi32>
    %47 = arith.andi %44, %46 : vector<8x128xi1>
    %cst_13 = arith.constant 0.000000e+00 : f32
    %48 = vector.broadcast %40 : f32 to vector<8x128xf32>
    %49 = vector.broadcast %cst_13 : f32 to vector<8x128xf32>
    %50 = arith.select %47, %48, %49 : vector<8x128xi1>, vector<8x128xf32>
    %c0_14 = arith.constant 0 : index
    %c0_15 = arith.constant 0 : index
    %51 = vector.load %arg3[%c0_14, %c0_15] : memref<8x128xf32, #tpu.memory_space<vmem>>, vector<8x128xf32>
    tpu.vector_store %arg3[%c0_14, %c0_15], %50 {strides = array<i32>} : memref<8x128xf32, #tpu.memory_space<vmem>>, vector<8x128xf32>,
    return
  }
  func.func @transform_0(%arg0: i32) -> (i32, i32) {
    %c0_i32 = arith.constant 0 : i32
    %c0_i32_0 = arith.constant 0 : i32
    return %arg0, %c0_i32 : i32, i32
  }
  func.func @transform_1(%arg0: i32) -> (i32, i32) {
    %c0_i32 = arith.constant 0 : i32
    %c0_i32_0 = arith.constant 0 : i32
    return %arg0, %c0_i32 : i32, i32
  }
  func.func @transform_2(%arg0: i32) -> (i32, i32) {
    %c0_i32 = arith.constant 0 : i32
    %c0_i32_0 = arith.constant 0 : i32
    return %arg0, %c0_i32 : i32, i32
  }
}

</mosaic_0001>

<llo_original>
// kernel: tpu_custom_call.1
$region0: #{tpu_custom_call.1}
  #allocation0 [shape = 'u32[]', space=smem, size = 0x4, offset = 0x4, fixed_abs, tag = 'smem constant byte address 0x4 - core index']
  #allocation1 [shape = 'u32[144,128]{1,0:T(1,128)}', space=vmem, size = 0x12000, scoped, tag = 'internal scratch']
  %s0 = inlined_call_operand.vmem [shape: f32[37,16], index: 0, kind: input, shape index: {}]
  %s1 = inlined_call_operand.vmem [shape: s32[37,1], index: 1, kind: input, shape index: {}]
  %s2 = inlined_call_operand.hbm [shape: f32[8,128], index: 2, kind: output, shape index: {}]
  %s3 = sld [smem:[#allocation0]]
  $region18: #{tpu_custom_call.1} parent=0
    _
  %s5 = ssub.s32 1, %s3
  %s6 = scalar_select 0, %s5, %s3
  $region1: #{tpu_custom_call.1} parent=0
    #allocation2 [shape = 'u8[4096]{0}', space=vmem, size = 0x1000, scoped, tag = 'output window, operand 0, single buffered']
    #allocation3 [shape = 's32[1]{0}', space=sflag, size = 0x4, scoped, tag = 'scoped memory for tpu_custom_call.1']
    %7 = vsyncpa [#allocation3], 0
    // Predicated region
    $region2: #{tpu_custom_call.1} parent=1 // pred_check
      _
    $region3: #{tpu_custom_call.1} parent=1 // pred_check_branch
      %9 = sbr.rel (0) target = $region5
    $region4: #{tpu_custom_call.1} parent=1 // pred_region
      _
    $region5: #{tpu_custom_call.1} parent=1 // pred_fallthru
      _
    // Predicated region
    $region6: #{tpu_custom_call.1} parent=1 // pred_check
      _
    $region7: #{tpu_custom_call.1} parent=1 // pred_check_branch
      %11 = sbr.rel (0) target = $region9
    $region8: #{tpu_custom_call.1} parent=1 // pred_region
      _
    $region9: #{tpu_custom_call.1} parent=1 // pred_fallthru
      _
    %v12 = vld [vmem:[%s0] sm:$0xff]
    %v13 = vld [vmem:[%s0 + $0x8] sm:$0xff]
    %v14 = vld [vmem:[%s0 + $0x10] sm:$0xff]
    %v15 = vld [vmem:[%s0 + $0x18] sm:$0xff]
    %v16 = vld [vmem:[%s0 + $0x20] sm:$0xff]
    %v17 = vld [vmem:[%s1] sm:$0xff]
    %v18 = vld [vmem:[%s1 + $0x8] sm:$0xff]
    %v19 = vld [vmem:[%s1 + $0x10] sm:$0xff]
    %v20 = vld [vmem:[%s1 + $0x18] sm:$0xff]
    %v21 = vld [vmem:[%s1 + $0x20] sm:$0xff]
    %vm22 = vcmask 130048
    %v23 = vsel %vm22, %v12, -inf
    %24 = vmax.xlane.f32.xlu0 %v23
    %v25 = vpop.xlane.xlu0 %24
    %v26 = vsel %vm22, %v13, -inf
    %27 = vmax.xlane.f32.xlu0 %v26
    %v28 = vpop.xlane.xlu0 %27
    %v29 = vsel %vm22, %v14, -inf
    %30 = vmax.xlane.f32.xlu0 %v29
    %v31 = vpop.xlane.xlu0 %30
    %v32 = vsel %vm22, %v15, -inf
    %33 = vmax.xlane.f32.xlu0 %v32
    %v34 = vpop.xlane.xlu0 %33
    %v35 = vsel %vm22, %v16, -inf
    %36 = vmax.xlane.f32.xlu0 %v35
    %v37 = vpop.xlane.xlu0 %36
    %v38 = vsub.f32 %v12, %v25
    %v39 = vsub.f32 %v13, %v28
    %v40 = vsub.f32 %v14, %v31
    %v41 = vsub.f32 %v15, %v34
    %v42 = vsub.f32 %v16, %v37
    %v43 = vmul.f32 %v38, 1.442695
    %v44 = vpow.pop %v43
    %v45 = vmul.f32 %v39, 1.442695
    %v46 = vpow.pop %v45
    %v47 = vmul.f32 %v40, 1.442695
    %v48 = vpow.pop %v47
    %v49 = vmul.f32 %v41, 1.442695
    %v50 = vpow.pop %v49
    %v51 = vmul.f32 %v42, 1.442695
    %v52 = vpow.pop %v51
    %v53 = vsel %vm22, %v44, 0.0
    %54 = vadd.xlane.f32.xlu0 %v53
    %v55 = vpop.xlane.xlu0 %54
    %v56 = vsel %vm22, %v46, 0.0
    %57 = vadd.xlane.f32.xlu0 %v56
    %v58 = vpop.xlane.xlu0 %57
    %v59 = vsel %vm22, %v48, 0.0
    %60 = vadd.xlane.f32.xlu0 %v59
    %v61 = vpop.xlane.xlu0 %60
    %v62 = vsel %vm22, %v50, 0.0
    %63 = vadd.xlane.f32.xlu0 %v62
    %v64 = vpop.xlane.xlu0 %63
    %v65 = vsel %vm22, %v52, 0.0
    %66 = vadd.xlane.f32.xlu0 %v65
    %v67 = vpop.xlane.xlu0 %66
    %v68 = vlog2.pop %v55
    %v69 = vmul.f32 %v68, 0.6931472
    %v70 = vlog2.pop %v58
    %v71 = vmul.f32 %v70, 0.6931472
    %v72 = vlog2.pop %v61
    %v73 = vmul.f32 %v72, 0.6931472
    %v74 = vlog2.pop %v64
    %v75 = vmul.f32 %v74, 0.6931472
    %v76 = vlog2.pop %v67
    %v77 = vmul.f32 %v76, 0.6931472
    %v78 = vlaneseq
    %v79 = vand.u32 %v78, 127
    %80 = vset.pattern.permute.xlu0 0
    %81 = vperm.xlu0 %80, %v17
    %v82 = vpop.permute.xlu0 %81
    %83 = vset.pattern.permute.xlu0 0
    %84 = vperm.xlu0 %83, %v18
    %v85 = vpop.permute.xlu0 %84
    %86 = vset.pattern.permute.xlu0 0
    %87 = vperm.xlu0 %86, %v19
    %v88 = vpop.permute.xlu0 %87
    %89 = vset.pattern.permute.xlu0 0
    %90 = vperm.xlu0 %89, %v20
    %v91 = vpop.permute.xlu0 %90
    %92 = vset.pattern.permute.xlu0 0
    %93 = vperm.xlu0 %92, %v21
    %v94 = vpop.permute.xlu0 %93
    %vm95 = vcmp.eq.s32.totalorder %v79, %v82
    %vm96 = vcmp.eq.s32.totalorder %v79, %v85
    %vm97 = vcmp.eq.s32.totalorder %v79, %v88
    %vm98 = vcmp.eq.s32.totalorder %v79, %v91
    %vm99 = vcmp.eq.s32.totalorder %v79, %v94
    %v100 = vsel %vm95, %v38, 0.0
    %v101 = vsel %vm96, %v39, 0.0
    %v102 = vsel %vm97, %v40, 0.0
    %v103 = vsel %vm98, %v41, 0.0
    %v104 = vsel %vm99, %v42, 0.0
    %v105 = vsel %vm22, %v100, 0.0
    %106 = vadd.xlane.f32.xlu0 %v105
    %v107 = vpop.xlane.xlu0 %106
    %v108 = vsel %vm22, %v101, 0.0
    %109 = vadd.xlane.f32.xlu0 %v108
    %v110 = vpop.xlane.xlu0 %109
    %v111 = vsel %vm22, %v102, 0.0
    %112 = vadd.xlane.f32.xlu0 %v111
    %v113 = vpop.xlane.xlu0 %112
    %v114 = vsel %vm22, %v103, 0.0
    %115 = vadd.xlane.f32.xlu0 %v114
    %v116 = vpop.xlane.xlu0 %115
    %v117 = vsel %vm22, %v104, 0.0
    %118 = vadd.xlane.f32.xlu0 %v117
    %v119 = vpop.xlane.xlu0 %118
    %v120 = vsub.f32 %v107, %v69
    %v121 = vsub.f32 %v110, %v71
    %v122 = vsub.f32 %v113, %v73
    %v123 = vsub.f32 %v116, %v75
    %v124 = vsub.f32 %v119, %v77
    %v125 = vmin.f32 %v120, 0.0
    %v126 = vmin.f32 %v121, 0.0
    %v127 = vmin.f32 %v122, 0.0
    %v128 = vmin.f32 %v123, 0.0
    %v129 = vmin.f32 %v124, 0.0
    %v130 = vmul.f32 %v125, 1.442695
    %v131 = vpow.pop %v130
    %v132 = vmul.f32 %v126, 1.442695
    %v133 = vpow.pop %v132
    %v134 = vmul.f32 %v127, 1.442695
    %v135 = vpow.pop %v134
    %v136 = vmul.f32 %v128, 1.442695
    %v137 = vpow.pop %v136
    %v138 = vmul.f32 %v129, 1.442695
    %v139 = vpow.pop %v138
    %v140 = vsub.f32 1.0, %v131
    %v141 = vsub.f32 1.0, %v133
    %v142 = vsub.f32 1.0, %v135
    %v143 = vsub.f32 1.0, %v137
    %v144 = vsub.f32 1.0, %v139
    %v145 = vmax.f32 %v140, 0.0
    %v146 = vmax.f32 %v141, 0.0
    %v147 = vmax.f32 %v142, 0.0
    %v148 = vmax.f32 %v143, 0.0
    %v149 = vmax.f32 %v144, 0.0
    %v150 = vmul.f32 %v145, %v145
    %v151 = vmul.f32 %v146, %v146
    %v152 = vmul.f32 %v147, %v147
    %v153 = vmul.f32 %v148, %v148
    %v154 = vmul.f32 %v149, %v149
    %v155 = vmul.f32 %v150, -0.25
    %v156 = vmul.f32 %v151, -0.25
    %v157 = vmul.f32 %v152, -0.25
    %v158 = vmul.f32 %v153, -0.25
    %v159 = vmul.f32 %v154, -0.25
    %v160 = vmul.f32 %v155, %v125
    %v161 = vmul.f32 %v156, %v126
    %v162 = vmul.f32 %v157, %v127
    %v163 = vmul.f32 %v158, %v128
    %v164 = vmul.f32 %v159, %v129
    %v165 = vlaneseq
    %v166 = vshrl.u32 %v165, 7
    %v167 = vadd.s32 %v166, 8
    %v168 = vadd.s32 %v166, 16
    %v169 = vadd.s32 %v166, 24
    %v170 = vadd.s32 %v166, 32
    %s171 = smul.u32 0, 40
    %v172 = vstv %s171
    %v173 = vadd.s32 %v172, %v166
    %v174 = vadd.s32 %v172, %v167
    %v175 = vadd.s32 %v172, %v168
    %v176 = vadd.s32 %v172, %v169
    %v177 = vadd.s32 %v172, %v170
    %vm178 = vcmp.lt.s32.totalorder %v173, 37
    %vm179 = vcmp.lt.s32.totalorder %v174, 37
    %vm180 = vcmp.lt.s32.totalorder %v175, 37
    %vm181 = vcmp.lt.s32.totalorder %v176, 37
    %vm182 = vcmp.lt.s32.totalorder %v177, 37
    %v183 = vsel %vm178, %v160, 0.0
    %v184 = vsel %vm179, %v161, 0.0
    %v185 = vsel %vm180, %v162, 0.0
    %v186 = vsel %vm181, %v163, 0.0
    %v187 = vsel %vm182, %v164, 0.0
    %vm188 = vcmask 7168
    %v189 = vsel %vm188, %v183, 0.0
    %v190 = vsel %vm188, %v184, 0.0
    %v191 = vadd.f32 %v189, %v190
    %v192 = vsel %vm188, %v185, 0.0
    %v193 = vadd.f32 %v191, %v192
    %v194 = vsel %vm188, %v186, 0.0
    %v195 = vadd.f32 %v193, %v194
    %v196 = vsel %vm188, %v187, 0.0
    %v197 = vadd.f32 %v195, %v196
    %198 = vadd.xlane.f32.xlu0 %v197
    %v199 = vpop.xlane.xlu0 %198
    %v200 = vrot.slane %v199, 4
    %v201 = vadd.f32 %v199, %v200
    %v202 = vrot.slane %v201, 2
    %v203 = vadd.f32 %v201, %v202
    %v204 = vrot.slane %v203, 1
    %v205 = vadd.f32 %v203, %v204
    %s206 = vtos %v205
    %vm207 = vcmp.eq.s32.totalorder %v166, 0
    %vm208 = vcmp.eq.s32.totalorder %v79, 0
    %vm209 = vmand %vm207, %vm208
    %v210 = vstv %s206
    %v211 = vsel %vm209, %v210, 0.0
    %212 = vst [vmem:[#allocation2] sm:$0xff] %v211
    // Predicated region
    $region10: #{tpu_custom_call.1} parent=1 // pred_check
      _
    $region11: #{tpu_custom_call.1} parent=1 // pred_check_branch
      %214 = sbr.rel (0) target = $region13
    $region12: #{tpu_custom_call.1} parent=1 // pred_region
      %s216 = ssub.s32 128, 128
      %217 = vsyncadd [#allocation3], %s216
      %s219 = sshll.u32 [#allocation2], 4
      %s220 = int_to_ptr.vmem [resolvable:$true] %s219
      %222 = dma.vmem_to_hbm [thread:$0]  %s220, 128, %s2, [#allocation3]
    $region13: #{tpu_custom_call.1} parent=1 // pred_fallthru
      _
    // Predicated region
    $region14: #{tpu_custom_call.1} parent=1 // pred_check
      _
    $region15: #{tpu_custom_call.1} parent=1 // pred_check_branch
      %224 = sbr.rel (0) target = $region17
    $region16: #{tpu_custom_call.1} parent=1 // pred_region
      %225 = dma.done [#allocation3], 128
    $region17: #{tpu_custom_call.1} parent=1 // pred_fallthru
      _
    %226 = vsyncpa [#allocation3], 1

</llo_original>
